<compile_context>
chip_gen: v7x
topology: tpu7x:2x2x1
jax: 0.10.0
libtpu: 0.0.40
codegen_flags: <defaults>
</compile_context>

<pallas_src>
import jax
import jax.numpy as jnp
from jax.experimental import pallas as pl
from jax.experimental.pallas import tpu as pltpu


def _add_kernel(x_ref, y_ref, o_ref):
    # Elementwise binary hot path: runs entirely in VMEM on the VPU.
    o_ref[...] = x_ref[...] + y_ref[...]


_LANE_CANDIDATES = (1024, 512, 256, 128)
_MIN_GRID_STEPS = 4            # >= 2 steps per TensorCore on v7x (2 TCs)
_SINGLE_BLOCK_BYTES = 512 * 1024


def _sublane_multiple(dtype) -> int:
    """Packed-sublane multiple: 8 for 32-bit, 16 for 16-bit, 32 for 8-bit dtypes."""
    itemsize = jnp.dtype(dtype).itemsize
    if itemsize >= 4:
        return 8
    if itemsize == 2:
        return 16
    return 32


def _device_kind() -> str:
    try:
        return jax.devices()[0].device_kind.lower()
    except Exception:
        return ""


def _pick_block_bytes(kind: str) -> int:
    # v5e (~820 GB/s): per-step overhead is already ~5% at 2 MiB; bigger blocks
    # would overflow the 16 MiB scoped-VMEM default for little gain.
    # v6e/v7x (and unknown): 4 MiB/array keeps per-step overhead <8% even at
    # v7x's ~3.2 TB/s; 3 arrays x 2-3 buffers still fits comfortably.
    if "v5 lite" in kind or "v5e" in kind or "v5lite" in kind:
        return 2 * 1024 * 1024
    return 4 * 1024 * 1024


def _pick_lanes(n: int, sub: int):
    """Largest lane width (multiple of 128) dividing n, preferring a row count
    that is a multiple of the packed-sublane count `sub`."""
    best = None
    for cand in _LANE_CANDIDATES:
        if n % cand == 0:
            if best is None:
                best = cand
            if (n // cand) % sub == 0:
                return cand
    return best


def _add_2d(x2: jax.Array, y2: jax.Array, *, block_bytes: int, sub: int,
            kind: str, donate_x: bool) -> jax.Array:
    """x2 + y2 for a lane-dense 2D slab (rows, lanes) with lanes % 128 == 0."""
    rows, lanes = x2.shape
    itemsize = jnp.dtype(x2.dtype).itemsize
    row_bytes = lanes * itemsize
    total_bytes = rows * row_bytes
    aliases = {0: 0} if donate_x else {}
    cost = pl.CostEstimate(flops=rows * lanes, transcendentals=0,
                           bytes_accessed=3 * total_bytes)

    # ---- Tiny path: single full-array block, no grid bookkeeping.
    if total_bytes <= _SINGLE_BLOCK_BYTES or rows < 2 * sub:
        return pl.pallas_call(
            _add_kernel,
            out_shape=jax.ShapeDtypeStruct((rows, lanes), x2.dtype),
            input_output_aliases=aliases,
            cost_estimate=cost,
        )(x2, y2)

    # ---- Tiled streaming path.
    cap_rows = max(sub, ((block_bytes // row_bytes) // sub) * sub)        # VMEM cap
    want_rows = max(sub, ((-(-rows // _MIN_GRID_STEPS)) // sub) * sub)    # >=4 steps
    tile_rows = min(rows, cap_rows, want_rows)
    grid = (pl.cdiv(rows, tile_rows),)

    # 3-deep input pipelining only on v7x (short steps can expose DMA latency);
    # default double buffering elsewhere keeps v5e comfortably inside VMEM.
    in_spec = pl.BlockSpec((tile_rows, lanes), lambda i: (i, 0))
    if "v7" in kind and hasattr(pl, "Buffered"):
        try:
            in_spec = pl.BlockSpec((tile_rows, lanes), lambda i: (i, 0),
                                   pipeline_mode=pl.Buffered(3))
        except TypeError:
            pass  # older pallas without pipeline_mode: keep default depth 2

    # 3 arrays x (2-3) buffers + headroom; floor at 32 MiB, cap under v7x's
    # 64 MiB physical VMEM.  (v5e/v6e physical VMEM is 128 MiB.)
    block_bytes_actual = tile_rows * row_bytes
    vmem_limit = min(max(8 * block_bytes_actual + (8 << 20), 32 << 20), 60 << 20)

    return pl.pallas_call(
        _add_kernel,
        out_shape=jax.ShapeDtypeStruct((rows, lanes), x2.dtype),
        grid=grid,
        in_specs=[in_spec, in_spec],
        out_specs=pl.BlockSpec((tile_rows, lanes), lambda i: (i, 0)),
        compiler_params=pltpu.CompilerParams(
            dimension_semantics=("parallel",),
            vmem_limit_bytes=vmem_limit,
        ),
        input_output_aliases=aliases,
        cost_estimate=cost,
    )(x2, y2)


def eltwise_binary_add(x: jax.Array, y: jax.Array, *, donate_x: bool = False) -> jax.Array:
    """out = x + y via a Pallas TPU kernel.  x and y must have the same shape/dtype."""
    assert x.shape == y.shape, "ModelDirect eltwise binary: shapes must match"
    assert x.dtype == y.dtype, "ModelDirect eltwise binary: dtypes must match"

    orig_shape = x.shape
    total = int(x.size)
    if total == 0:
        return x + y

    kind = _device_kind()
    sub = _sublane_multiple(x.dtype)
    block_bytes = _pick_block_bytes(kind)

    x_flat = x.reshape(-1)
    y_flat = y.reshape(-1)

    lanes = _pick_lanes(total, sub)
    if lanes is not None:
        # Zero-copy lane-dense view of the whole tensor.
        rows = total // lanes
        out2 = _add_2d(x_flat.reshape(rows, lanes), y_flat.reshape(rows, lanes),
                       block_bytes=block_bytes, sub=sub, kind=kind, donate_x=donate_x)
        return out2.reshape(orig_shape)

    # Element count not a multiple of 128: kernel on the aligned prefix, plain
    # VPU add on the <128-element tail.  No whole-tensor input padding; the
    # remaining extra HBM traffic is only the output concatenate.
    aligned = (total // 128) * 128
    if aligned == 0:
        return (x_flat + y_flat).reshape(orig_shape)   # <128 elements total
    lanes = _pick_lanes(aligned, sub)
    rows = aligned // lanes
    head = _add_2d(x_flat[:aligned].reshape(rows, lanes),
                   y_flat[:aligned].reshape(rows, lanes),
                   block_bytes=block_bytes, sub=sub, kind=kind, donate_x=False)
    tail = x_flat[aligned:] + y_flat[aligned:]
    return jnp.concatenate([head.reshape(-1), tail]).reshape(orig_shape)


if __name__ == "__main__":
    key = jax.random.PRNGKey(0)
    kx, ky = jax.random.split(key)

    # 1) Small NCHW shape consistent with the eltwise-binary test module.
    B, C, H, W = 2, 4, 16, 16
    x = jax.random.normal(kx, (B, C, H, W), dtype=jnp.float32)
    y = jax.random.normal(ky, (B, C, H, W), dtype=jnp.float32)
    out = jax.block_until_ready(eltwise_binary_add(x, y))
    assert out.shape == (B, C, H, W)
    assert jnp.allclose(out, x + y, atol=1e-6, rtol=1e-6)

    # 2) Mid-size shape exercising the tiled multi-step "parallel" grid
    #    (230400 elems ~= 0.9 MiB f32, lanes=128, partial last block).
    big_shape = (3, 8, 100, 96)
    bx = jax.random.normal(kx, big_shape, dtype=jnp.float32)
    by = jax.random.normal(ky, big_shape, dtype=jnp.float32)
    bout = jax.block_until_ready(eltwise_binary_add(bx, by))
    assert jnp.allclose(bout, bx + by, atol=1e-6, rtol=1e-6)

    # 3) Non-128-multiple element count: aligned-prefix kernel + tiny tail op.
    odd_shape = (7, 13, 5)  # 455 elements
    ox = jax.random.normal(kx, odd_shape, dtype=jnp.float32)
    oy = jax.random.normal(ky, odd_shape, dtype=jnp.float32)
    oout = jax.block_until_ready(eltwise_binary_add(ox, oy))
    assert jnp.allclose(oout, ox + oy, atol=1e-6, rtol=1e-6)

    # 4) bf16 exercises the 16-row packed-sublane rounding.
    hx = x.astype(jnp.bfloat16)
    hy = y.astype(jnp.bfloat16)
    hout = jax.block_until_ready(eltwise_binary_add(hx, hy))
    assert jnp.allclose(hout.astype(jnp.float32), (hx + hy).astype(jnp.float32),
                        atol=1e-2, rtol=1e-2)

    print("KERNEL_OK")
</pallas_src>

<mosaic_0001>
module attributes {stable_mosaic.version = 11 : i64} {
  func.func @_add_kernel(%arg0: memref<8x256xf32, #tpu.memory_space<vmem>>, %arg1: memref<8x256xf32, #tpu.memory_space<vmem>>, %arg2: memref<8x256xf32, #tpu.memory_space<vmem>>) attributes {dimension_semantics = [], scalar_prefetch = 0 : i64, scratch_operands = 0 : i64, tpu.core_type = #tpu.core_type<tc>} {
    %c0 = arith.constant 0 : index
    %c0_0 = arith.constant 0 : index
    %0 = vector.load %arg0[%c0, %c0_0] : memref<8x256xf32, #tpu.memory_space<vmem>>, vector<8x256xf32>
    %c0_1 = arith.constant 0 : index
    %c0_2 = arith.constant 0 : index
    %1 = vector.load %arg1[%c0_1, %c0_2] : memref<8x256xf32, #tpu.memory_space<vmem>>, vector<8x256xf32>
    %2 = arith.addf %0, %1 : vector<8x256xf32>
    %c0_3 = arith.constant 0 : index
    %c0_4 = arith.constant 0 : index
    %3 = vector.load %arg2[%c0_3, %c0_4] : memref<8x256xf32, #tpu.memory_space<vmem>>, vector<8x256xf32>
    tpu.vector_store %arg2[%c0_3, %c0_4], %2 {strides = array<i32>} : memref<8x256xf32, #tpu.memory_space<vmem>>, vector<8x256xf32>,
    return
  }
}

</mosaic_0001>

<llo_original>
// kernel: tpu_custom_call.1
$region0: #{tpu_custom_call.1}
  #allocation0 [shape = 'u32[]', space=smem, size = 0x4, offset = 0x4, fixed_abs, tag = 'smem constant byte address 0x4 - core index']
  #allocation1 [shape = 'u32[144,128]{1,0:T(1,128)}', space=vmem, size = 0x12000, scoped, tag = 'internal scratch']
  %s0 = inlined_call_operand.hbm [shape: f32[8,256], index: 0, kind: input, shape index: {}]
  %s1 = inlined_call_operand.hbm [shape: f32[8,256], index: 1, kind: input, shape index: {}]
  %s2 = inlined_call_operand.hbm [shape: f32[8,256], index: 2, kind: output, shape index: {}]
  %s3 = sld [smem:[#allocation0]]
  $region26: #{tpu_custom_call.1} parent=0
    _
  %s5 = ssub.s32 1, %s3
  %s6 = scalar_select 0, %s5, %s3
  $region1: #{tpu_custom_call.1} parent=0
    #allocation2 [shape = 'u8[8192]{0}', space=vmem, size = 0x2000, scoped, tag = 'input window, operand 0, single buffered']
    #allocation3 [shape = 's32[1]{0}', space=sflag, size = 0x4, scoped, tag = 'scoped memory for tpu_custom_call.1']
    #allocation4 [shape = 's32[1]{0}', space=sflag, size = 0x4, scoped, tag = 'scoped memory for tpu_custom_call.1']
    #allocation5 [shape = 'u8[8192]{0}', space=vmem, size = 0x2000, scoped, tag = 'input window, operand 1, single buffered']
    #allocation6 [shape = 's32[1]{0}', space=sflag, size = 0x4, scoped, tag = 'scoped memory for tpu_custom_call.1']
    #allocation7 [shape = 'u8[8192]{0}', space=vmem, size = 0x2000, scoped, tag = 'output window, operand 0, single buffered']
    %7 = vsyncpa [#allocation3], 0
    %8 = vsyncpa [#allocation6], 0
    %9 = vsyncpa [#allocation4], 0
    // Predicated region
    $region2: #{tpu_custom_call.1} parent=1 // pred_check
      _
    $region3: #{tpu_custom_call.1} parent=1 // pred_check_branch
      %11 = sbr.rel (0) target = $region5
    $region4: #{tpu_custom_call.1} parent=1 // pred_region
      %s13 = ssub.s32 256, 256
      %14 = vsyncadd [#allocation3], %s13
      %s16 = sshll.u32 [#allocation2], 4
      %s17 = int_to_ptr.vmem [resolvable:$true] %s16
      %19 = dma.hbm_to_vmem [thread:$0]  %s0, 256, %s17, [#allocation3]
    $region5: #{tpu_custom_call.1} parent=1 // pred_fallthru
      _
    // Predicated region
    $region6: #{tpu_custom_call.1} parent=1 // pred_check
      _
    $region7: #{tpu_custom_call.1} parent=1 // pred_check_branch
      %21 = sbr.rel (0) target = $region9
    $region8: #{tpu_custom_call.1} parent=1 // pred_region
      %s23 = ssub.s32 256, 256
      %24 = vsyncadd [#allocation6], %s23
      %s26 = sshll.u32 [#allocation5], 4
      %s27 = int_to_ptr.vmem [resolvable:$true] %s26
      %29 = dma.hbm_to_vmem [thread:$0]  %s1, 256, %s27, [#allocation6]
    $region9: #{tpu_custom_call.1} parent=1 // pred_fallthru
      _
    // Predicated region
    $region10: #{tpu_custom_call.1} parent=1 // pred_check
      _
    $region11: #{tpu_custom_call.1} parent=1 // pred_check_branch
      %31 = sbr.rel (0) target = $region13
    $region12: #{tpu_custom_call.1} parent=1 // pred_region
      %32 = dma.done [#allocation3], 256
    $region13: #{tpu_custom_call.1} parent=1 // pred_fallthru
      _
    // Predicated region
    $region14: #{tpu_custom_call.1} parent=1 // pred_check
      _
    $region15: #{tpu_custom_call.1} parent=1 // pred_check_branch
      %34 = sbr.rel (0) target = $region17
    $region16: #{tpu_custom_call.1} parent=1 // pred_region
      %35 = dma.done [#allocation6], 256
    $region17: #{tpu_custom_call.1} parent=1 // pred_fallthru
      _
    %v36 = vld [vmem:[#allocation2] sm:$0xff]
    %v37 = vld [vmem:[#allocation2 + $0x8] sm:$0xff]
    %v38 = vld [vmem:[#allocation5] sm:$0xff]
    %v39 = vld [vmem:[#allocation5 + $0x8] sm:$0xff]
    %v40 = vadd.f32 %v36, %v38
    %v41 = vadd.f32 %v37, %v39
    %42 = vst [vmem:[#allocation7] sm:$0xff] %v40
    %43 = vst [vmem:[#allocation7 + $0x8] sm:$0xff] %v41
    // Predicated region
    $region18: #{tpu_custom_call.1} parent=1 // pred_check
      _
    $region19: #{tpu_custom_call.1} parent=1 // pred_check_branch
      %45 = sbr.rel (0) target = $region21
    $region20: #{tpu_custom_call.1} parent=1 // pred_region
      %s47 = ssub.s32 256, 256
      %48 = vsyncadd [#allocation4], %s47
      %s50 = sshll.u32 [#allocation7], 4
      %s51 = int_to_ptr.vmem [resolvable:$true] %s50
      %53 = dma.vmem_to_hbm [thread:$0]  %s51, 256, %s2, [#allocation4]
    $region21: #{tpu_custom_call.1} parent=1 // pred_fallthru
      _
    // Predicated region
    $region22: #{tpu_custom_call.1} parent=1 // pred_check
      _
    $region23: #{tpu_custom_call.1} parent=1 // pred_check_branch
      %55 = sbr.rel (0) target = $region25
    $region24: #{tpu_custom_call.1} parent=1 // pred_region
      %56 = dma.done [#allocation4], 256
    $region25: #{tpu_custom_call.1} parent=1 // pred_fallthru
      _
    %57 = vsyncpa [#allocation3], 1
    %58 = vsyncpa [#allocation6], 1
    %59 = vsyncpa [#allocation4], 1

</llo_original>
